<compile_context>
chip_gen: v7x
topology: tpu7x:2x2x1
jax: 0.10.0
libtpu: 0.0.40
codegen_flags: <defaults>
</compile_context>

<pallas_src>
import functools
import math

import jax
import jax.numpy as jnp
from jax import lax
from jax.experimental import pallas as pl
from jax.experimental.pallas import tpu as pltpu


def _rmsnorm_kernel(x_ref, w_ref, o_ref, *, eps, mul_dtype):
    # x_ref: (tile_rows, dim)   w_ref: (1, dim)   o_ref: (tile_rows, dim)
    x = x_ref[...]
    xf = x.astype(jnp.float32)
    ms = jnp.mean(xf * xf, axis=-1, keepdims=True)        # XLU lane reduce (f32)
    inv = lax.rsqrt(ms + eps)                              # EUP rsqrt (f32)
    scale = (1.0 + w_ref[...].astype(jnp.float32)).astype(mul_dtype)
    # Final multiplies on the VPU in `mul_dtype` (f32, or bf16 on v6e/v7x).
    o_ref[...] = (x.astype(mul_dtype) * inv.astype(mul_dtype) * scale).astype(o_ref.dtype)


def _tpu_config():
    """Returns (target_tile_bytes, vmem_limit_bytes, allow_low_precision_mul)."""
    vmem = None
    try:
        vmem = pltpu.get_tpu_info().vmem_capacity_bytes
    except Exception:
        vmem = None
    kind = ""
    try:
        kind = jax.devices()[0].device_kind.lower()
    except Exception:
        pass
    is_v5e = ("v5 lite" in kind) or ("v5e" in kind) or ("v5litepod" in kind)
    is_v7 = (vmem is not None and vmem <= (64 << 20)) or ("7" in kind)
    if is_v7:
        # v7x: 64 MiB VMEM / TC, ~3.2 TB/s HBM -> 4 MiB tiles, 32 MiB scoped.
        return (4 << 20), (32 << 20), True
    # v5e / v6e: 128 MiB VMEM -> 8 MiB tiles under a 64 MiB scoped limit.
    return (8 << 20), (64 << 20), (not is_v5e)


def _choose_row_tile(rows, dim, itemsize, target_tile_bytes):
    """Row tile: multiple of the sublane pack, ~target bytes, even tile count."""
    pack = max(8, 32 // itemsize)              # 8 rows f32, 16 bf16, 32 int8/fp8
    row_bytes = max(1, dim * itemsize)
    rows_packed = -(-rows // pack)             # rows in sublane-pack units
    tile = max(pack, (target_tile_bytes // row_bytes) // pack * pack)
    tile = min(tile, rows_packed * pack)
    # Nudge the tile down until the grid-step count is even so both of v7x's
    # TensorCores get equal work (always achievable for rows_packed >= 2;
    # neutral on single-TC v5e/v6e, negligible tile shrink for large rows).
    if rows_packed >= 2:
        while tile > pack and (-(-rows // tile)) % 2 != 0:
            tile -= pack
    return tile


def rmsnorm(x, weight, eps=1e-6):
    """RMSNorm over the last axis of `x`, scaled by (1 + weight)."""
    orig_shape = x.shape
    dim = orig_shape[-1]
    assert weight.shape == (dim,)
    # Perf advisory: dim should be a multiple of 128 for lane-dense stores.

    rows = int(math.prod(orig_shape[:-1])) if len(orig_shape) > 1 else 1
    x2d = x.reshape(rows, dim)
    w2d = weight.reshape(1, dim)

    itemsize = jnp.dtype(x.dtype).itemsize
    target_tile_bytes, vmem_limit, low_prec = _tpu_config()
    tile = _choose_row_tile(rows, dim, itemsize, target_tile_bytes)
    num_tiles = pl.cdiv(rows, tile)

    mul_dtype = x.dtype if (low_prec and x.dtype == jnp.bfloat16) else jnp.float32

    cost = pl.CostEstimate(
        flops=4 * rows * dim,
        transcendentals=rows,
        bytes_accessed=2 * rows * dim * itemsize
        + dim * jnp.dtype(weight.dtype).itemsize,
    )

    out2d = pl.pallas_call(
        functools.partial(_rmsnorm_kernel, eps=eps, mul_dtype=mul_dtype),
        out_shape=jax.ShapeDtypeStruct((rows, dim), x.dtype),
        grid_spec=pltpu.PrefetchScalarGridSpec(
            num_scalar_prefetch=0,
            grid=(num_tiles,),
            in_specs=[
                pl.BlockSpec((tile, dim), lambda i: (i, 0)),
                pl.BlockSpec((1, dim), lambda i: (0, 0)),
            ],
            out_specs=pl.BlockSpec((tile, dim), lambda i: (i, 0)),
        ),
        compiler_params=pltpu.CompilerParams(
            dimension_semantics=("parallel",),
            vmem_limit_bytes=vmem_limit,
        ),
        cost_estimate=cost,
    )(x2d, w2d)

    return out2d.reshape(orig_shape)


def _ref_rmsnorm(x, weight, eps):
    xf = x.astype(jnp.float32)
    inv = lax.rsqrt(jnp.mean(xf * xf, axis=-1, keepdims=True) + eps)
    return xf * inv * (1.0 + weight.astype(jnp.float32))


if __name__ == "__main__":
    # Small shapes consistent with the module: (batch=2, seq=8, hidden=32).
    batch, seq, hidden = 2, 8, 32
    eps = 1e-6

    key = jax.random.PRNGKey(0)
    x = jax.random.normal(key, (batch, seq, hidden), dtype=jnp.float32)

    # Deterministic parameter init matching RMSNorm.__init__: weight = zeros(dim).
    weight = jnp.zeros((hidden,), dtype=jnp.float32)

    out = jax.block_until_ready(rmsnorm(x, weight, eps))
    ref = _ref_rmsnorm(x, weight, eps).astype(x.dtype)
    assert out.shape == x.shape and out.dtype == x.dtype
    assert jnp.allclose(out, ref, atol=1e-5, rtol=1e-5)

    # Ragged row count: exercises the masked partial last block (no pad/slice).
    x2 = jax.random.normal(jax.random.PRNGKey(1), (3, 5, hidden), dtype=jnp.float32)
    out2 = jax.block_until_ready(rmsnorm(x2, weight, eps))
    assert jnp.allclose(out2, _ref_rmsnorm(x2, weight, eps), atol=1e-5, rtol=1e-5)

    # bf16 path (low-precision final multiplies on v6e/v7x, f32 on v5e).
    x3 = jax.random.normal(jax.random.PRNGKey(2), (batch, seq, hidden)).astype(jnp.bfloat16)
    out3 = jax.block_until_ready(rmsnorm(x3, weight, eps))
    assert out3.dtype == jnp.bfloat16
    assert jnp.allclose(out3.astype(jnp.float32), _ref_rmsnorm(x3, weight, eps),
                        atol=3e-2, rtol=3e-2)

    print("KERNEL_OK")
</pallas_src>

<mosaic_0001>
module attributes {stable_mosaic.version = 11 : i64} {
  func.func @_rmsnorm_kernel(%arg0: i32, %arg1: memref<8x32xf32, #tpu.memory_space<vmem>>, %arg2: memref<1x32xf32, #tpu.memory_space<vmem>>, %arg3: memref<8x32xf32, #tpu.memory_space<vmem>>) attributes {dimension_semantics = [#tpu.dimension_semantics<parallel>], iteration_bounds = array<i64: 2>, scalar_prefetch = 0 : i64, scratch_operands = 0 : i64, tpu.core_type = #tpu.core_type<tc>, window_params = [{transform_indices = @transform_0, window_bounds = array<i64: 8, 32>}, {pipeline_mode = #tpu.pipeline_mode<synchronous>, transform_indices = @transform_1, window_bounds = array<i64: 1, 32>}, {transform_indices = @transform_2, window_bounds = array<i64: 8, 32>}]} {
    %c0 = arith.constant 0 : index
    %c0_0 = arith.constant 0 : index
    %0 = vector.load %arg1[%c0, %c0_0] : memref<8x32xf32, #tpu.memory_space<vmem>>, vector<8x32xf32>
    %1 = arith.mulf %0, %0 : vector<8x32xf32>
    %cst = arith.constant dense<0.000000e+00> : vector<8xf32>
    %2 = vector.multi_reduction <add>, %1, %cst [1] : vector<8x32xf32> to vector<8xf32>
    %3 = vector.shape_cast %2 : vector<8xf32> to vector<8x1xf32>
    %cst_1 = arith.constant 3.200000e+01 : f32
    %4 = vector.broadcast %cst_1 : f32 to vector<8x1xf32>
    %5 = arith.divf %3, %4 : vector<8x1xf32>
    %cst_2 = arith.constant 9.99999997E-7 : f32
    %6 = vector.broadcast %cst_2 : f32 to vector<8x1xf32>
    %7 = arith.addf %5, %6 : vector<8x1xf32>
    %8 = math.rsqrt %7 : vector<8x1xf32>
    %c0_3 = arith.constant 0 : index
    %c0_4 = arith.constant 0 : index
    %9 = vector.load %arg2[%c0_3, %c0_4] : memref<1x32xf32, #tpu.memory_space<vmem>>, vector<1x32xf32>
    %cst_5 = arith.constant 1.000000e+00 : f32
    %10 = vector.broadcast %cst_5 : f32 to vector<1x32xf32>
    %11 = arith.addf %10, %9 : vector<1x32xf32>
    %12 = vector.broadcast %8 : vector<8x1xf32> to vector<8x32xf32>
    %13 = arith.mulf %0, %12 : vector<8x32xf32>
    %14 = vector.broadcast %11 : vector<1x32xf32> to vector<8x32xf32>
    %15 = arith.mulf %13, %14 : vector<8x32xf32>
    %c0_6 = arith.constant 0 : index
    %c0_7 = arith.constant 0 : index
    %16 = vector.load %arg3[%c0_6, %c0_7] : memref<8x32xf32, #tpu.memory_space<vmem>>, vector<8x32xf32>
    tpu.vector_store %arg3[%c0_6, %c0_7], %15 {strides = array<i32>} : memref<8x32xf32, #tpu.memory_space<vmem>>, vector<8x32xf32>,
    return
  }
  func.func @transform_0(%arg0: i32) -> (i32, i32) {
    %c0_i32 = arith.constant 0 : i32
    %c0_i32_0 = arith.constant 0 : i32
    return %arg0, %c0_i32 : i32, i32
  }
  func.func @transform_1(%arg0: i32) -> (i32, i32) {
    %c0_i32 = arith.constant 0 : i32
    %c0_i32_0 = arith.constant 0 : i32
    %c0_i32_1 = arith.constant 0 : i32
    return %c0_i32, %c0_i32_0 : i32, i32
  }
  func.func @transform_2(%arg0: i32) -> (i32, i32) {
    %c0_i32 = arith.constant 0 : i32
    %c0_i32_0 = arith.constant 0 : i32
    return %arg0, %c0_i32 : i32, i32
  }
}

</mosaic_0001>

<llo_original>
// kernel: tpu_custom_call.1
$region0: #{tpu_custom_call.1}
  #allocation0 [shape = 'u32[]', space=smem, size = 0x4, offset = 0x4, fixed_abs, tag = 'smem constant byte address 0x4 - core index']
  #allocation1 [shape = 'u32[144,128]{1,0:T(1,128)}', space=vmem, size = 0x12000, scoped, tag = 'internal scratch']
  %s0 = inlined_call_operand.hbm [shape: f32[16,32], index: 0, kind: input, shape index: {}]
  %s1 = inlined_call_operand.hbm [shape: f32[1,32], index: 1, kind: input, shape index: {}]
  %s2 = inlined_call_operand.hbm [shape: f32[16,32], index: 2, kind: output, shape index: {}]
  %s3 = sld [smem:[#allocation0]]
  $region49: #{tpu_custom_call.1} parent=0
    _
  %s5 = ssub.s32 1, %s3
  %s6 = scalar_select 0, %s5, %s3
  $region1: #{tpu_custom_call.1} parent=0
    #allocation2 [shape = 'u8[8192]{0}', space=vmem, size = 0x2000, scoped, tag = 'input window, operand 0']
    #allocation3 [shape = 's32[2]{0}', space=sflag, size = 0x8, scoped, tag = 'scoped memory for tpu_custom_call.1']
    #allocation4 [shape = 's32[2]{0}', space=sflag, size = 0x8, scoped, tag = 'scoped memory for tpu_custom_call.1']
    #allocation5 [shape = 'u8[512]{0}', space=vmem, size = 0x400, scoped, tag = 'input window, operand 1, single buffered']
    #allocation6 [shape = 's32[1]{0}', space=sflag, size = 0x4, scoped, tag = 'scoped memory for tpu_custom_call.1']
    #allocation7 [shape = 'u8[8192]{0}', space=vmem, size = 0x2000, scoped, tag = 'output window, operand 0']
    %7 = vsyncpa [#allocation3], 0
    %s8 = scalar_lea.sflag [#allocation3], 1
    %9 = vsyncpa %s8, 0
    %10 = vsyncpa [#allocation6], 0
    %11 = vsyncpa [#allocation4], 0
    %s12 = scalar_lea.sflag [#allocation4], 1
    %13 = vsyncpa %s12, 0
    loop: start=0, step=1, limit=4
    $region2: #{tpu_custom_call.1} parent=1 // loop_pre_header
      _
    $region3: #{tpu_custom_call.1} parent=1 // loop_header
      %s15 = sphi 0, %s19
      %p16 = scmp.ge.s32.totalorder %s15, 4
      %s25 = sphi 0, %s27
      %s28 = sphi 0, %s25
      %s29 = sphi 0, %s28
      %s45 = sphi 0, %s29
      %s49 = sphi 0, %s49
      %s51 = sphi 0, %s49
      %s52 = sphi 0, %s51
      %s66 = sphi 0, %s52
      %s72 = sphi 0, %s74
      %s75 = sphi 0, %s72
      %s76 = sphi 0, %s75
      %s92 = sphi 0, %s76
    $region4: #{tpu_custom_call.1} parent=1 // loop_header_branch
      %18 = sbr.rel (%p16) target = $region8
    $region5: #{tpu_custom_call.1} parent=1 // loop_body
      %s20 = ssub.s32 %s15, 1
      %s21 = ssub.s32 %s15, 2
      %s22 = sadd.s32 %s15, 1
      %s23 = ssub.s32 %s15, %s22
      %p24 = scmp.eq.s32.totalorder %s23, 0
      %s26 = sadd.s32 %s25, 1
      %s27 = scalar_select %p24, %s25, %s26
      %p30 = pneg %p24
      %p31 = scmp.eq.s32.totalorder %s15, 1
      %p32 = por %p30, %p31
      %p33 = scmp.ne.s32.totalorder %s25, %s28
      %p34 = scmp.eq.s32.totalorder %s15, 0
      %p35 = por %p33, %p34
      %p36 = scmp.ne.s32.totalorder %s25, %s28
      %p37 = scmp.eq.s32.totalorder %s20, 1
      %p38 = por %p36, %p37
      %p39 = scmp.ne.s32.totalorder %s28, %s29
      %p40 = scmp.eq.s32.totalorder %s20, 0
      %p41 = por %p39, %p40
      %p42 = scmp.ne.s32.totalorder %s28, %s29
      %p43 = scmp.eq.s32.totalorder %s21, 1
      %p44 = por %p42, %p43
      %p46 = scmp.ne.s32.totalorder %s29, %s45
      %p47 = scmp.eq.s32.totalorder %s21, 0
      %p48 = por %p46, %p47
      %s50 = sadd.s32 %s49, 1
      %p53 = scmp.eq.s32.totalorder %s15, 1
      %p54 = scmp.ne.s32.totalorder %s49, %s51
      %p55 = scmp.eq.s32.totalorder %s15, 0
      %p56 = por %p54, %p55
      %p57 = scmp.ne.s32.totalorder %s49, %s51
      %p58 = scmp.eq.s32.totalorder %s20, 1
      %p59 = por %p57, %p58
      %p60 = scmp.ne.s32.totalorder %s51, %s52
      %p61 = scmp.eq.s32.totalorder %s20, 0
      %p62 = por %p60, %p61
      %p63 = scmp.ne.s32.totalorder %s51, %s52
      %p64 = scmp.eq.s32.totalorder %s21, 1
      %p65 = por %p63, %p64
      %p67 = scmp.ne.s32.totalorder %s52, %s66
      %p68 = scmp.eq.s32.totalorder %s21, 0
      %p69 = por %p67, %p68
      %s70 = ssub.s32 %s15, %s22
      %p71 = scmp.eq.s32.totalorder %s70, 0
      %s73 = sadd.s32 %s72, 1
      %s74 = scalar_select %p71, %s72, %s73
      %p77 = pneg %p71
      %p78 = scmp.eq.s32.totalorder %s15, 1
      %p79 = por %p77, %p78
      %p80 = scmp.ne.s32.totalorder %s72, %s75
      %p81 = scmp.eq.s32.totalorder %s15, 0
      %p82 = por %p80, %p81
      %p83 = scmp.ne.s32.totalorder %s72, %s75
      %p84 = scmp.eq.s32.totalorder %s20, 1
      %p85 = por %p83, %p84
      %p86 = scmp.ne.s32.totalorder %s75, %s76
      %p87 = scmp.eq.s32.totalorder %s20, 0
      %p88 = por %p86, %p87
      %p89 = scmp.ne.s32.totalorder %s75, %s76
      %p90 = scmp.eq.s32.totalorder %s21, 1
      %p91 = por %p89, %p90
      %p93 = scmp.ne.s32.totalorder %s76, %s92
      %p94 = scmp.eq.s32.totalorder %s21, 0
      %p95 = por %p93, %p94
      %p96 = scmp.le.s32.totalorder 1, %s15
      %p97 = scmp.lt.s32.totalorder %s15, 3
      %p98 = pnand %p96, %p97
      %p99 = pneg %p98
      // Predicated region
      $region9: #{tpu_custom_call.1} parent=5 // pred_check
        _
      $region10: #{tpu_custom_call.1} parent=5 // pred_check_branch
        %101 = sbr.rel (%p98) target = $region12
      $region11: #{tpu_custom_call.1} parent=5 // pred_region
        %s102 = ssub.s32 %s15, 1
        // Predicated region
        $region13: #{tpu_custom_call.1} parent=11 // pred_check
          %p103 = pneg %p62
        $region14: #{tpu_custom_call.1} parent=11 // pred_check_branch
          %105 = sbr.rel (%p103) target = $region16
        $region15: #{tpu_custom_call.1} parent=11 // pred_region
          %s107 = ssub.s32 16, 16
          %108 = vsyncadd [#allocation6], %s107
          %s110 = sshll.u32 [#allocation5], 4
          %s111 = int_to_ptr.vmem [resolvable:$true] %s110
          %113 = dma.hbm_to_vmem [thread:$0]  %s1, 16, %s111, [#allocation6]
        $region16: #{tpu_custom_call.1} parent=11 // pred_fallthru
          _
      $region12: #{tpu_custom_call.1} parent=5 // pred_fallthru
        _
      %p114 = scmp.lt.s32.totalorder %s15, 2
      // Predicated region
      $region17: #{tpu_custom_call.1} parent=5 // pred_check
        %p115 = pneg %p114
      $region18: #{tpu_custom_call.1} parent=5 // pred_check_branch
        %117 = sbr.rel (%p115) target = $region20
      $region19: #{tpu_custom_call.1} parent=5 // pred_region
        // Predicated region
        $region21: #{tpu_custom_call.1} parent=19 // pred_check
          %p118 = pneg %p35
        $region22: #{tpu_custom_call.1} parent=19 // pred_check_branch
          %120 = sbr.rel (%p118) target = $region24
        $region23: #{tpu_custom_call.1} parent=19 // pred_region
          %s121 = sand.u32 %s25, 1
          %s122 = scalar_lea.sflag [#allocation3], %s121
          %s123 = sand.u32 %s25, 1
          %s124 = smul.addr %s123, 8
          %s125 = scalar_lea.vmem [#allocation2], %s124
          %s127 = ssub.s32 128, 128
          %128 = vsyncadd %s122, %s127
          %s129 = smul.addr %s15, 128
          %s130 = scalar_lea.hbm %s0, %s129
          %s132 = sshll.u32 %s125, 4
          %s133 = int_to_ptr.vmem [resolvable:$true] %s132
          %135 = dma.hbm_to_vmem [thread:$0]  %s130, 128, %s133, %s122
        $region24: #{tpu_custom_call.1} parent=19 // pred_fallthru
          _
      $region20: #{tpu_custom_call.1} parent=5 // pred_fallthru
        _
      %p136 = scmp.le.s32.totalorder 1, %s15
      %p137 = scmp.lt.s32.totalorder %s15, 3
      %p138 = pnand %p136, %p137
      %p139 = pneg %p138
      // Predicated region
      $region25: #{tpu_custom_call.1} parent=5 // pred_check
        _
      $region26: #{tpu_custom_call.1} parent=5 // pred_check_branch
        %141 = sbr.rel (%p138) target = $region28
      $region27: #{tpu_custom_call.1} parent=5 // pred_region
        %s142 = ssub.s32 %s15, 1
        %s143 = sand.u32 %s28, 1
        %s144 = scalar_lea.sflag [#allocation3], %s143
        %s145 = sand.u32 %s28, 1
        %s146 = smul.addr %s145, 8
        %s147 = scalar_lea.vmem [#allocation2], %s146
        // Predicated region
        $region29: #{tpu_custom_call.1} parent=27 // pred_check
          %p148 = pneg %p41
        $region30: #{tpu_custom_call.1} parent=27 // pred_check_branch
          %150 = sbr.rel (%p148) target = $region32
        $region31: #{tpu_custom_call.1} parent=27 // pred_region
          %151 = dma.done %s144, 128
        $region32: #{tpu_custom_call.1} parent=27 // pred_fallthru
          _
        // Predicated region
        $region33: #{tpu_custom_call.1} parent=27 // pred_check
          %p152 = pneg %p62
        $region34: #{tpu_custom_call.1} parent=27 // pred_check_branch
          %154 = sbr.rel (%p152) target = $region36
        $region35: #{tpu_custom_call.1} parent=27 // pred_region
          %155 = dma.done [#allocation6], 16
        $region36: #{tpu_custom_call.1} parent=27 // pred_fallthru
          _
        %s156 = sand.u32 %s28, 1
        %s157 = scalar_lea.sflag [#allocation3], %s156
        %s158 = sand.u32 %s28, 1
        %s159 = smul.addr %s158, 8
        %s160 = scalar_lea.vmem [#allocation2], %s159
        %p161 = pneg %p41
        %p162 = pneg %p38
        %p163 = pneg %p62
        %p164 = pneg %p59
        %p165 = pneg %p88
        %p166 = pneg %p85
        %s167 = sand.u32 %s75, 1
        %s168 = scalar_lea.sflag [#allocation4], %s167
        %s169 = sand.u32 %s75, 1
        %s170 = smul.addr %s169, 8
        %s171 = scalar_lea.vmem [#allocation7], %s170
        %v172 = vld [vmem:[%s147] sm:$0xff]
        %v173 = vmul.f32 %v172, %v172
        %vm174 = vcmask 261120
        %v175 = vsel %vm174, %v173, 0.0
        %176 = vadd.xlane.f32.xlu0 %v175
        %v177 = vpop.xlane.xlu0 %176
        %v178 = vrcp.pop 32.0
        %v179 = vmul.f32 %v177, %v178
        %v180 = vadd.f32 %v179, 1e-06
        %v181 = vrsqrt.pop %v180
        %v182 = vld [vmem:[#allocation5] sm:$0x1]
        %v183 = vadd.f32 %v182, 1.0
        %v184 = vmul.f32 %v172, %v181
        %v186 = vlaneseq
        %v187 = vshrl.u32 %v186, 7
        %v188 = vsub.s32 0, %v187
        %v189 = vrot.slane %v183, %v188
        %v191 = vmul.f32 %v184, %v189
        %192 = vst.msk [vmem:[%s171] sm:$0xff] %vm174, %v191
        %s193 = sand.u32 %s75, 1
        %s194 = scalar_lea.sflag [#allocation4], %s193
        %s195 = sand.u32 %s75, 1
        %s196 = smul.addr %s195, 8
        %s197 = scalar_lea.vmem [#allocation7], %s196
        // Predicated region
        $region37: #{tpu_custom_call.1} parent=27 // pred_check
          %p198 = pneg %p85
        $region38: #{tpu_custom_call.1} parent=27 // pred_check_branch
          %200 = sbr.rel (%p198) target = $region40
        $region39: #{tpu_custom_call.1} parent=27 // pred_region
          %s202 = ssub.s32 128, 128
          %203 = vsyncadd %s194, %s202
          %s204 = smul.addr %s20, 128
          %s205 = scalar_lea.hbm %s2, %s204
          %s207 = sshll.u32 %s197, 4
          %s208 = int_to_ptr.vmem [resolvable:$true] %s207
          %210 = dma.vmem_to_hbm [thread:$0]  %s208, 128, %s205, %s194
        $region40: #{tpu_custom_call.1} parent=27 // pred_fallthru
          _
      $region28: #{tpu_custom_call.1} parent=5 // pred_fallthru
        _
      %p211 = scmp.le.s32.totalorder 2, %s15
      // Predicated region
      $region41: #{tpu_custom_call.1} parent=5 // pred_check
        %p212 = pneg %p211
      $region42: #{tpu_custom_call.1} parent=5 // pred_check_branch
        %214 = sbr.rel (%p212) target = $region44
      $region43: #{tpu_custom_call.1} parent=5 // pred_region
        %s215 = ssub.s32 %s15, 2
        // Predicated region
        $region45: #{tpu_custom_call.1} parent=43 // pred_check
          %p216 = pneg %p91
        $region46: #{tpu_custom_call.1} parent=43 // pred_check_branch
          %218 = sbr.rel (%p216) target = $region48
        $region47: #{tpu_custom_call.1} parent=43 // pred_region
          %s219 = sand.u32 %s76, 1
          %s220 = scalar_lea.sflag [#allocation4], %s219
          %s221 = sand.u32 %s76, 1
          %s222 = smul.addr %s221, 8
          %s223 = scalar_lea.vmem [#allocation7], %s222
          %224 = dma.done %s220, 128
        $region48: #{tpu_custom_call.1} parent=43 // pred_fallthru
          _
      $region44: #{tpu_custom_call.1} parent=5 // pred_fallthru
        _
    $region6: #{tpu_custom_call.1} parent=1 // loop_footer
      %s19 = sadd.s32 1, %s15
    $region7: #{tpu_custom_call.1} parent=1 // loop_footer_branch
      %14 = sbr.rel target = $region3
    $region8: #{tpu_custom_call.1} parent=1 // loop_exit
      _
    %225 = vsyncpa [#allocation3], 1
    %s226 = scalar_lea.sflag [#allocation3], 1
    %227 = vsyncpa %s226, 1
    %228 = vsyncpa [#allocation6], 1
    %229 = vsyncpa [#allocation4], 1
    %s230 = scalar_lea.sflag [#allocation4], 1
    %231 = vsyncpa %s230, 1

</llo_original>
